<compile_context>
chip_gen: v6e
topology: v6e:2x2x1
jax: 0.10.0
libtpu: 0.0.40
codegen_flags: <defaults>
</compile_context>

<pallas_src>
import functools

import jax
import jax.numpy as jnp
from jax import lax
from jax.experimental import pallas as pl
from jax.experimental.pallas import tpu as pltpu


def _round_up(x, m):
    return -(-x // m) * m


# -----------------------------------------------------------------------------
# Kernel: one grid step = TH output rows of one image.
#   fused im2col in VMEM (hoisted, de-duplicated lane-shifted row slices)
#   -> one (C_out_p, K*K*C_in_p) x (K*K*C_in_p, TH*OW_pad) MXU GEMM (f32 acc)
#   -> f32 epilogue (BN scale, shift, ReLU/PReLU) -> bf16 lane-dense store.
# -----------------------------------------------------------------------------
def _conv_tile_kernel(*refs, row_block_sizes, K, TH, stride, dilation, ow_pad, nl):
    n_in = len(row_block_sizes)
    in_refs = refs[:n_in]
    w_ref, scale_ref, shift_ref, alpha_ref, o_ref = refs[n_in:]

    halo = dilation * (K - 1)
    n_rows = (TH - 1) * stride + halo + 1        # physical input rows used

    def load_row(a):                             # a is a static python int
        off = a
        for j, size in enumerate(row_block_sizes):
            if off < size:
                return in_refs[j][0, off]        # (C_in_p, W_in_pad) bf16
            off -= size
        raise AssertionError("row outside fetched blocks")

    # One slice per (physical row, kw), reused by every output row (hoisted).
    shifted = []
    for a in range(n_rows):
        row = load_row(a)
        shifted.append([row[:, kw * dilation:kw * dilation + ow_pad]
                        for kw in range(K)])

    # Single column matrix: contraction ordered (kh, kw, c) to match the weight
    # layout; lanes ordered (output row, output col) -> 128-multiple lane width.
    col = jnp.concatenate(
        [jnp.concatenate(
            [shifted[r * stride + kh * dilation][kw]
             for kh in range(K) for kw in range(K)], axis=0)
         for r in range(TH)],
        axis=1)                                   # (K*K*C_in_p, TH*ow_pad)

    acc = jnp.dot(w_ref[...], col, preferred_element_type=jnp.float32)
    acc = acc * scale_ref[...] + shift_ref[...]   # eval-mode BN scale + shift (f32)
    if nl == "relu":
        acc = jnp.maximum(acc, 0.0)
    elif nl == "prelu":
        alpha = alpha_ref[0]                      # shared scalar from SMEM
        acc = jnp.where(acc > 0, acc, alpha * acc)
    o_ref[0, 0] = acc.astype(o_ref.dtype)         # bf16 lane-dense store


# -----------------------------------------------------------------------------
# Wrapper: layout prep (pad / transpose / bf16 cast) + pallas_call + unpack.
# -----------------------------------------------------------------------------
@functools.partial(jax.jit, static_argnames=(
    "c_out", "c_in_p", "c_out_p", "K", "stride", "padding", "dilation", "nl"))
def _conv2d_bias_act(x, w_mat, scale, shift, alpha, *, c_out, c_in_p, c_out_p,
                     K, stride, padding, dilation, nl):
    """x: (N, C_in, H, W) f32 NCHW -> (N, C_out, OH, OW) f32 NCHW."""
    N, C_in, H, W = x.shape
    s, d, p = stride, dilation, padding
    halo = d * (K - 1)

    H_c, W_c = H + 2 * p, W + 2 * p
    OH = (H_c - halo - 1) // s + 1
    OW = (W_c - halo - 1) // s + 1

    ow_full = W_c - halo                    # stride-1 column starts
    ow_pad = _round_up(ow_full, 128)        # lane-dense GEMM-N / store width
    W_in_pad = ow_pad + halo                # input width so all kw slices fit

    TH = min(8, OH)                         # output rows per grid step
    extra = max(0, halo - s + 1)            # halo rows past the main row block
    if extra > 0 and (TH * s) % extra != 0:
        for cand in range(TH + 1, 17):      # keep the thin-halo path if possible
            if (cand * s) % extra == 0:
                TH = cand
                break
    num_t = -(-OH // TH)
    RB = TH * s                             # input rows advanced per step

    in_specs = [pl.BlockSpec((1, RB, c_in_p, W_in_pad), lambda n, t: (n, t, 0, 0))]
    row_block_sizes = [RB]
    if extra == 0:
        H_need = num_t * RB
    elif RB % extra == 0:                   # thin halo block (~1.25x input reads)
        step = RB // extra
        in_specs.append(pl.BlockSpec(
            (1, extra, c_in_p, W_in_pad),
            lambda n, t, step=step: (n, (t + 1) * step, 0, 0)))
        row_block_sizes.append(extra)
        H_need = num_t * RB + extra
    else:                                   # fallback: full duplicate block(s)
        n_full = -(-extra // RB)
        for j in range(1, n_full + 1):
            in_specs.append(pl.BlockSpec(
                (1, RB, c_in_p, W_in_pad),
                lambda n, t, j=j: (n, t + j, 0, 0)))
            row_block_sizes.append(RB)
        H_need = (num_t + n_full) * RB

    # Pad channels -> c_in_p, rows -> halo'd row-tile extent, width -> lane-dense
    # extent; channels on sublanes, width on lanes; bf16 MXU operands.
    x_p = jnp.pad(
        x, ((0, 0), (0, c_in_p - C_in),
            (p, max(0, H_need - H - p)), (p, W_in_pad - W - p)))
    x_r = x_p.transpose(0, 2, 1, 3).astype(jnp.bfloat16)  # (N, H', C_in_p, W_in_pad)

    KKC = K * K * c_in_p
    kernel = functools.partial(
        _conv_tile_kernel, row_block_sizes=tuple(row_block_sizes), K=K, TH=TH,
        stride=s, dilation=d, ow_pad=ow_pad, nl=nl)

    # Explicit VMEM budget (double-buffered blocks + in-kernel col/acc), clamped
    # to v7x's 64 MiB physical VMEM so a v6e-sized tiling cannot overshoot.
    vmem_est = (2 * sum(row_block_sizes) * c_in_p * W_in_pad * 2
                + 2 * c_out_p * TH * ow_pad * 2
                + 2 * c_out_p * (KKC * 2 + 8)
                + 2 * KKC * TH * ow_pad * 2
                + c_out_p * TH * ow_pad * 4
                + ((TH - 1) * s + halo + 1) * K * c_in_p * ow_pad * 2)
    vmem_limit = int(min(max(2 * vmem_est, 32 * 1024 * 1024), 64 * 1024 * 1024))

    out = pl.pallas_call(
        kernel,
        out_shape=jax.ShapeDtypeStruct((N, num_t, c_out_p, TH * ow_pad),
                                       jnp.bfloat16),
        grid_spec=pltpu.PrefetchScalarGridSpec(
            num_scalar_prefetch=0,
            grid=(N, num_t),
            in_specs=in_specs + [
                pl.BlockSpec((c_out_p, KKC), lambda n, t: (0, 0)),   # resident weight
                pl.BlockSpec((c_out_p, 1), lambda n, t: (0, 0)),     # BN scale (f32)
                pl.BlockSpec((c_out_p, 1), lambda n, t: (0, 0)),     # shift (f32)
                pl.BlockSpec(memory_space=pltpu.MemorySpace.SMEM),   # PReLU alpha
            ],
            out_specs=pl.BlockSpec((1, 1, c_out_p, TH * ow_pad),
                                   lambda n, t: (n, t, 0, 0)),
        ),
        compiler_params=pltpu.CompilerParams(
            dimension_semantics=("parallel", "parallel"),
            vmem_limit_bytes=vmem_limit),
    )(*([x_r] * len(row_block_sizes)), w_mat, scale, shift, alpha)

    # (N, num_t, C_out_p, TH*ow_pad) bf16 -> NCHW f32; drop channel/row/lane pads
    # and apply the width stride.
    out = out.reshape(N, num_t, c_out_p, TH, ow_pad)
    out = out.transpose(0, 2, 1, 3, 4).reshape(N, c_out_p, num_t * TH, ow_pad)
    out = out[:, :c_out, :OH, ::s][:, :, :, :OW]
    # TODO(synk): in a full MCNN stack, keep the internal row-tiled bf16 layout
    # between layers (and build strided columns in-kernel for stride>1) instead
    # of this boundary transpose/cast back to NCHW f32.
    return out.astype(jnp.float32)


class Conv2dPallas:
    """JAX/Pallas equivalent of MCNN's Conv2d(conv -> [eval-mode bn] -> relu/prelu)."""

    def __init__(self, in_channels, out_channels, kernel_size, stride=1,
                 NL="relu", same_padding=False, bn=False, dilation=1, key=None):
        self.in_channels = in_channels
        self.out_channels = out_channels
        self.kernel_size = kernel_size
        self.stride = stride
        self.dilation = dilation
        self.nl = NL if NL in ("relu", "prelu") else None
        if dilation == 1:
            self.padding = int((kernel_size - 1) // 2) if same_padding else 0
        else:
            self.padding = dilation
        self.bn = bn

        key = jax.random.PRNGKey(0) if key is None else key
        kw_, kb_ = jax.random.split(key)
        fan_in = in_channels * kernel_size * kernel_size
        bound = 1.0 / (fan_in ** 0.5)
        # PyTorch Conv2d default init: uniform(-1/sqrt(fan_in), 1/sqrt(fan_in)).
        self.weight = jax.random.uniform(
            kw_, (out_channels, in_channels, kernel_size, kernel_size),
            jnp.float32, -bound, bound)
        self.bias = jax.random.uniform(kb_, (out_channels,), jnp.float32, -bound, bound)

        # BatchNorm2d(eps=0.001, affine=True) parameters.
        # TODO(synk): training-mode BN (batch statistics, momentum=0) not
        # implemented; the eval-mode running-stats form is used instead.
        self.bn_gamma = jnp.ones((out_channels,), jnp.float32)
        self.bn_beta = jnp.zeros((out_channels,), jnp.float32)
        self.bn_mean = jnp.zeros((out_channels,), jnp.float32)
        self.bn_var = jnp.ones((out_channels,), jnp.float32)
        self.bn_eps = 0.001

        # nn.PReLU() default: single shared parameter 0.25.
        # TODO(synk): per-channel PReLU(num_parameters=C) not implemented.
        self.prelu_alpha = jnp.full((1,), 0.25, jnp.float32)

    def _prepare_params(self):
        C_out, C_in, K = self.out_channels, self.in_channels, self.kernel_size
        c_in_p = _round_up(C_in, 16)        # bf16 packs 16 sublanes per vreg
        c_out_p = _round_up(C_out, 8)       # sublane-align the GEMM M dim
        if self.bn:
            scale = self.bn_gamma / jnp.sqrt(self.bn_var + self.bn_eps)
            shift = (self.bias - self.bn_mean) * scale + self.bn_beta
        else:
            scale = jnp.ones((C_out,), jnp.float32)
            shift = self.bias
        # BN scale stays in the f32 epilogue (not folded into bf16 weights).
        w = jnp.pad(self.weight,
                    ((0, c_out_p - C_out), (0, c_in_p - C_in), (0, 0), (0, 0)))
        # (C_out_p, K*K*C_in_p), contraction ordered (kh, kw, c) as in the kernel.
        w_mat = w.transpose(0, 2, 3, 1).reshape(c_out_p, K * K * c_in_p)
        w_mat = w_mat.astype(jnp.bfloat16)
        scale_p = jnp.pad(scale, (0, c_out_p - C_out)).reshape(c_out_p, 1)
        shift_p = jnp.pad(shift, (0, c_out_p - C_out)).reshape(c_out_p, 1)
        return (w_mat, scale_p.astype(jnp.float32), shift_p.astype(jnp.float32),
                c_in_p, c_out_p)

    def __call__(self, x):
        w_mat, scale, shift, c_in_p, c_out_p = self._prepare_params()
        nl = self.nl if self.nl is not None else "none"
        return _conv2d_bias_act(
            x, w_mat, scale, shift, self.prelu_alpha,
            c_out=self.out_channels, c_in_p=c_in_p, c_out_p=c_out_p,
            K=self.kernel_size, stride=self.stride, padding=self.padding,
            dilation=self.dilation, nl=nl)


# -----------------------------------------------------------------------------
# Demo / self-check
# -----------------------------------------------------------------------------
if __name__ == "__main__":
    key = jax.random.PRNGKey(0)
    kx, kp = jax.random.split(key)

    N, C_in, H, W = 2, 4, 16, 16
    C_out, K = 8, 3
    x = jax.random.normal(kx, (N, C_in, H, W), jnp.float32)
    TOL = 5e-2   # bf16 GEMM operands / bf16 store vs f32 reference

    # --- Case 1: valid padding, no BN, ReLU -----------------------------------
    mod = Conv2dPallas(C_in, C_out, K, stride=1, NL="relu",
                       same_padding=False, bn=False, key=kp)
    out = jax.block_until_ready(mod(x))
    ref = lax.conv_general_dilated(
        x, mod.weight, window_strides=(1, 1), padding="VALID",
        dimension_numbers=("NCHW", "OIHW", "NCHW"))
    ref = jnp.maximum(ref + mod.bias.reshape(1, C_out, 1, 1), 0.0)
    assert out.shape == (N, C_out, H - K + 1, W - K + 1), out.shape
    assert float(jnp.max(jnp.abs(out - ref))) < TOL

    # --- Case 2: same padding, eval-mode BN, PReLU -----------------------------
    mod2 = Conv2dPallas(C_in, C_out, K, stride=1, NL="prelu",
                        same_padding=True, bn=True, key=kp)
    out2 = jax.block_until_ready(mod2(x))
    ref2 = lax.conv_general_dilated(
        x, mod2.weight, window_strides=(1, 1), padding=((1, 1), (1, 1)),
        dimension_numbers=("NCHW", "OIHW", "NCHW")) + mod2.bias.reshape(1, C_out, 1, 1)
    sc = (mod2.bn_gamma / jnp.sqrt(mod2.bn_var + mod2.bn_eps)).reshape(1, C_out, 1, 1)
    ref2 = (ref2 - mod2.bn_mean.reshape(1, C_out, 1, 1)) * sc \
           + mod2.bn_beta.reshape(1, C_out, 1, 1)
    ref2 = jnp.where(ref2 > 0, ref2, 0.25 * ref2)
    assert out2.shape == (N, C_out, H, W), out2.shape
    assert float(jnp.max(jnp.abs(out2 - ref2))) < TOL

    # --- Case 3: stride 2, valid padding, ReLU ---------------------------------
    mod3 = Conv2dPallas(C_in, C_out, K, stride=2, NL="relu",
                        same_padding=False, bn=False, key=kp)
    out3 = jax.block_until_ready(mod3(x))
    ref3 = lax.conv_general_dilated(
        x, mod3.weight, window_strides=(2, 2), padding="VALID",
        dimension_numbers=("NCHW", "OIHW", "NCHW"))
    ref3 = jnp.maximum(ref3 + mod3.bias.reshape(1, C_out, 1, 1), 0.0)
    assert out3.shape == (N, C_out, (H - K) // 2 + 1, (W - K) // 2 + 1), out3.shape
    assert float(jnp.max(jnp.abs(out3 - ref3))) < TOL

    # --- Case 4: dilation 2 (module pads by dilation), ReLU --------------------
    mod4 = Conv2dPallas(C_in, C_out, K, stride=1, NL="relu",
                        same_padding=False, bn=False, dilation=2, key=kp)
    out4 = jax.block_until_ready(mod4(x))
    ref4 = lax.conv_general_dilated(
        x, mod4.weight, window_strides=(1, 1), padding=((2, 2), (2, 2)),
        rhs_dilation=(2, 2), dimension_numbers=("NCHW", "OIHW", "NCHW"))
    ref4 = jnp.maximum(ref4 + mod4.bias.reshape(1, C_out, 1, 1), 0.0)
    assert out4.shape == (N, C_out, H, W), out4.shape
    assert float(jnp.max(jnp.abs(out4 - ref4))) < TOL

    print("KERNEL_OK")
</pallas_src>

<mosaic_0001>
module attributes {stable_mosaic.version = 11 : i64} {
  func.func @_conv_tile_kernel(%arg0: i32, %arg1: i32, %arg2: memref<1x8x16x130xbf16, #tpu.memory_space<vmem>>, %arg3: memref<1x2x16x130xbf16, #tpu.memory_space<vmem>>, %arg4: memref<8x144xbf16, #tpu.memory_space<vmem>>, %arg5: memref<8x1xf32, #tpu.memory_space<vmem>>, %arg6: memref<8x1xf32, #tpu.memory_space<vmem>>, %arg7: memref<1xf32, #tpu.memory_space<smem>>, %arg8: memref<1x1x8x1024xbf16, #tpu.memory_space<vmem>>) attributes {dimension_semantics = [#tpu.dimension_semantics<parallel>, #tpu.dimension_semantics<parallel>], iteration_bounds = array<i64: 2, 2>, scalar_prefetch = 0 : i64, scratch_operands = 0 : i64, tpu.core_type = #tpu.core_type<tc>, window_params = [{transform_indices = @transform_0, window_bounds = array<i64: 1, 8, 16, 130>}, {transform_indices = @transform_1, window_bounds = array<i64: 1, 2, 16, 130>}, {pipeline_mode = #tpu.pipeline_mode<synchronous>, transform_indices = @transform_2, window_bounds = array<i64: 8, 144>}, {pipeline_mode = #tpu.pipeline_mode<synchronous>, transform_indices = @transform_3, window_bounds = array<i64: 8, 1>}, {pipeline_mode = #tpu.pipeline_mode<synchronous>, transform_indices = @transform_4, window_bounds = array<i64: 8, 1>}, {transform_indices = @transform_5, window_bounds = array<i64: 1>}, {transform_indices = @transform_6, window_bounds = array<i64: 1, 1, 8, 1024>}]} {
    %c0 = arith.constant 0 : index
    %c0_0 = arith.constant 0 : index
    %c0_1 = arith.constant 0 : index
    %c0_2 = arith.constant 0 : index
    %0 = vector.load %arg2[%c0, %c0_0, %c0_1, %c0_2] : memref<1x8x16x130xbf16, #tpu.memory_space<vmem>>, vector<1x1x16x130xbf16>
    %1 = vector.shape_cast %0 : vector<1x1x16x130xbf16> to vector<16x130xbf16>
    %2 = vector.extract_strided_slice %1 {offsets = [0, 0], sizes = [16, 128], strides = [1, 1]} : vector<16x130xbf16> to vector<16x128xbf16>
    %3 = vector.extract_strided_slice %1 {offsets = [0, 1], sizes = [16, 128], strides = [1, 1]} : vector<16x130xbf16> to vector<16x128xbf16>
    %4 = vector.extract_strided_slice %1 {offsets = [0, 2], sizes = [16, 128], strides = [1, 1]} : vector<16x130xbf16> to vector<16x128xbf16>
    %c0_3 = arith.constant 0 : index
    %c1 = arith.constant 1 : index
    %c0_4 = arith.constant 0 : index
    %c0_5 = arith.constant 0 : index
    %5 = vector.load %arg2[%c0_3, %c1, %c0_4, %c0_5] : memref<1x8x16x130xbf16, #tpu.memory_space<vmem>>, vector<1x1x16x130xbf16>
    %6 = vector.shape_cast %5 : vector<1x1x16x130xbf16> to vector<16x130xbf16>
    %7 = vector.extract_strided_slice %6 {offsets = [0, 0], sizes = [16, 128], strides = [1, 1]} : vector<16x130xbf16> to vector<16x128xbf16>
    %8 = vector.extract_strided_slice %6 {offsets = [0, 1], sizes = [16, 128], strides = [1, 1]} : vector<16x130xbf16> to vector<16x128xbf16>
    %9 = vector.extract_strided_slice %6 {offsets = [0, 2], sizes = [16, 128], strides = [1, 1]} : vector<16x130xbf16> to vector<16x128xbf16>
    %c0_6 = arith.constant 0 : index
    %c2 = arith.constant 2 : index
    %c0_7 = arith.constant 0 : index
    %c0_8 = arith.constant 0 : index
    %10 = vector.load %arg2[%c0_6, %c2, %c0_7, %c0_8] : memref<1x8x16x130xbf16, #tpu.memory_space<vmem>>, vector<1x1x16x130xbf16>
    %11 = vector.shape_cast %10 : vector<1x1x16x130xbf16> to vector<16x130xbf16>
    %12 = vector.extract_strided_slice %11 {offsets = [0, 0], sizes = [16, 128], strides = [1, 1]} : vector<16x130xbf16> to vector<16x128xbf16>
    %13 = vector.extract_strided_slice %11 {offsets = [0, 1], sizes = [16, 128], strides = [1, 1]} : vector<16x130xbf16> to vector<16x128xbf16>
    %14 = vector.extract_strided_slice %11 {offsets = [0, 2], sizes = [16, 128], strides = [1, 1]} : vector<16x130xbf16> to vector<16x128xbf16>
    %c0_9 = arith.constant 0 : index
    %c3 = arith.constant 3 : index
    %c0_10 = arith.constant 0 : index
    %c0_11 = arith.constant 0 : index
    %15 = vector.load %arg2[%c0_9, %c3, %c0_10, %c0_11] : memref<1x8x16x130xbf16, #tpu.memory_space<vmem>>, vector<1x1x16x130xbf16>
    %16 = vector.shape_cast %15 : vector<1x1x16x130xbf16> to vector<16x130xbf16>
    %17 = vector.extract_strided_slice %16 {offsets = [0, 0], sizes = [16, 128], strides = [1, 1]} : vector<16x130xbf16> to vector<16x128xbf16>
    %18 = vector.extract_strided_slice %16 {offsets = [0, 1], sizes = [16, 128], strides = [1, 1]} : vector<16x130xbf16> to vector<16x128xbf16>
    %19 = vector.extract_strided_slice %16 {offsets = [0, 2], sizes = [16, 128], strides = [1, 1]} : vector<16x130xbf16> to vector<16x128xbf16>
    %c0_12 = arith.constant 0 : index
    %c4 = arith.constant 4 : index
    %c0_13 = arith.constant 0 : index
    %c0_14 = arith.constant 0 : index
    %20 = vector.load %arg2[%c0_12, %c4, %c0_13, %c0_14] : memref<1x8x16x130xbf16, #tpu.memory_space<vmem>>, vector<1x1x16x130xbf16>
    %21 = vector.shape_cast %20 : vector<1x1x16x130xbf16> to vector<16x130xbf16>
    %22 = vector.extract_strided_slice %21 {offsets = [0, 0], sizes = [16, 128], strides = [1, 1]} : vector<16x130xbf16> to vector<16x128xbf16>
    %23 = vector.extract_strided_slice %21 {offsets = [0, 1], sizes = [16, 128], strides = [1, 1]} : vector<16x130xbf16> to vector<16x128xbf16>
    %24 = vector.extract_strided_slice %21 {offsets = [0, 2], sizes = [16, 128], strides = [1, 1]} : vector<16x130xbf16> to vector<16x128xbf16>
    %c0_15 = arith.constant 0 : index
    %c5 = arith.constant 5 : index
    %c0_16 = arith.constant 0 : index
    %c0_17 = arith.constant 0 : index
    %25 = vector.load %arg2[%c0_15, %c5, %c0_16, %c0_17] : memref<1x8x16x130xbf16, #tpu.memory_space<vmem>>, vector<1x1x16x130xbf16>
    %26 = vector.shape_cast %25 : vector<1x1x16x130xbf16> to vector<16x130xbf16>
    %27 = vector.extract_strided_slice %26 {offsets = [0, 0], sizes = [16, 128], strides = [1, 1]} : vector<16x130xbf16> to vector<16x128xbf16>
    %28 = vector.extract_strided_slice %26 {offsets = [0, 1], sizes = [16, 128], strides = [1, 1]} : vector<16x130xbf16> to vector<16x128xbf16>
    %29 = vector.extract_strided_slice %26 {offsets = [0, 2], sizes = [16, 128], strides = [1, 1]} : vector<16x130xbf16> to vector<16x128xbf16>
    %c0_18 = arith.constant 0 : index
    %c6 = arith.constant 6 : index
    %c0_19 = arith.constant 0 : index
    %c0_20 = arith.constant 0 : index
    %30 = vector.load %arg2[%c0_18, %c6, %c0_19, %c0_20] : memref<1x8x16x130xbf16, #tpu.memory_space<vmem>>, vector<1x1x16x130xbf16>
    %31 = vector.shape_cast %30 : vector<1x1x16x130xbf16> to vector<16x130xbf16>
    %32 = vector.extract_strided_slice %31 {offsets = [0, 0], sizes = [16, 128], strides = [1, 1]} : vector<16x130xbf16> to vector<16x128xbf16>
    %33 = vector.extract_strided_slice %31 {offsets = [0, 1], sizes = [16, 128], strides = [1, 1]} : vector<16x130xbf16> to vector<16x128xbf16>
    %34 = vector.extract_strided_slice %31 {offsets = [0, 2], sizes = [16, 128], strides = [1, 1]} : vector<16x130xbf16> to vector<16x128xbf16>
    %c0_21 = arith.constant 0 : index
    %c7 = arith.constant 7 : index
    %c0_22 = arith.constant 0 : index
    %c0_23 = arith.constant 0 : index
    %35 = vector.load %arg2[%c0_21, %c7, %c0_22, %c0_23] : memref<1x8x16x130xbf16, #tpu.memory_space<vmem>>, vector<1x1x16x130xbf16>
    %36 = vector.shape_cast %35 : vector<1x1x16x130xbf16> to vector<16x130xbf16>
    %37 = vector.extract_strided_slice %36 {offsets = [0, 0], sizes = [16, 128], strides = [1, 1]} : vector<16x130xbf16> to vector<16x128xbf16>
    %38 = vector.extract_strided_slice %36 {offsets = [0, 1], sizes = [16, 128], strides = [1, 1]} : vector<16x130xbf16> to vector<16x128xbf16>
    %39 = vector.extract_strided_slice %36 {offsets = [0, 2], sizes = [16, 128], strides = [1, 1]} : vector<16x130xbf16> to vector<16x128xbf16>
    %c0_24 = arith.constant 0 : index
    %c0_25 = arith.constant 0 : index
    %c0_26 = arith.constant 0 : index
    %c0_27 = arith.constant 0 : index
    %40 = vector.load %arg3[%c0_24, %c0_25, %c0_26, %c0_27] : memref<1x2x16x130xbf16, #tpu.memory_space<vmem>>, vector<1x1x16x130xbf16>
    %41 = vector.shape_cast %40 : vector<1x1x16x130xbf16> to vector<16x130xbf16>
    %42 = vector.extract_strided_slice %41 {offsets = [0, 0], sizes = [16, 128], strides = [1, 1]} : vector<16x130xbf16> to vector<16x128xbf16>
    %43 = vector.extract_strided_slice %41 {offsets = [0, 1], sizes = [16, 128], strides = [1, 1]} : vector<16x130xbf16> to vector<16x128xbf16>
    %44 = vector.extract_strided_slice %41 {offsets = [0, 2], sizes = [16, 128], strides = [1, 1]} : vector<16x130xbf16> to vector<16x128xbf16>
    %c0_28 = arith.constant 0 : index
    %c1_29 = arith.constant 1 : index
    %c0_30 = arith.constant 0 : index
    %c0_31 = arith.constant 0 : index
    %45 = vector.load %arg3[%c0_28, %c1_29, %c0_30, %c0_31] : memref<1x2x16x130xbf16, #tpu.memory_space<vmem>>, vector<1x1x16x130xbf16>
    %46 = vector.shape_cast %45 : vector<1x1x16x130xbf16> to vector<16x130xbf16>
    %47 = vector.extract_strided_slice %46 {offsets = [0, 0], sizes = [16, 128], strides = [1, 1]} : vector<16x130xbf16> to vector<16x128xbf16>
    %48 = vector.extract_strided_slice %46 {offsets = [0, 1], sizes = [16, 128], strides = [1, 1]} : vector<16x130xbf16> to vector<16x128xbf16>
    %49 = vector.extract_strided_slice %46 {offsets = [0, 2], sizes = [16, 128], strides = [1, 1]} : vector<16x130xbf16> to vector<16x128xbf16>
    %50 = tpu.concatenate %2, %3, %4, %7, %8, %9, %12, %13, %14 in 0 : vector<16x128xbf16>, vector<16x128xbf16>, vector<16x128xbf16>, vector<16x128xbf16>, vector<16x128xbf16>, vector<16x128xbf16>, vector<16x128xbf16>, vector<16x128xbf16>, vector<16x128xbf16> -> vector<144x128xbf16>
    %51 = tpu.concatenate %7, %8, %9, %12, %13, %14, %17, %18, %19 in 0 : vector<16x128xbf16>, vector<16x128xbf16>, vector<16x128xbf16>, vector<16x128xbf16>, vector<16x128xbf16>, vector<16x128xbf16>, vector<16x128xbf16>, vector<16x128xbf16>, vector<16x128xbf16> -> vector<144x128xbf16>
    %52 = tpu.concatenate %12, %13, %14, %17, %18, %19, %22, %23, %24 in 0 : vector<16x128xbf16>, vector<16x128xbf16>, vector<16x128xbf16>, vector<16x128xbf16>, vector<16x128xbf16>, vector<16x128xbf16>, vector<16x128xbf16>, vector<16x128xbf16>, vector<16x128xbf16> -> vector<144x128xbf16>
    %53 = tpu.concatenate %17, %18, %19, %22, %23, %24, %27, %28, %29 in 0 : vector<16x128xbf16>, vector<16x128xbf16>, vector<16x128xbf16>, vector<16x128xbf16>, vector<16x128xbf16>, vector<16x128xbf16>, vector<16x128xbf16>, vector<16x128xbf16>, vector<16x128xbf16> -> vector<144x128xbf16>
    %54 = tpu.concatenate %22, %23, %24, %27, %28, %29, %32, %33, %34 in 0 : vector<16x128xbf16>, vector<16x128xbf16>, vector<16x128xbf16>, vector<16x128xbf16>, vector<16x128xbf16>, vector<16x128xbf16>, vector<16x128xbf16>, vector<16x128xbf16>, vector<16x128xbf16> -> vector<144x128xbf16>
    %55 = tpu.concatenate %27, %28, %29, %32, %33, %34, %37, %38, %39 in 0 : vector<16x128xbf16>, vector<16x128xbf16>, vector<16x128xbf16>, vector<16x128xbf16>, vector<16x128xbf16>, vector<16x128xbf16>, vector<16x128xbf16>, vector<16x128xbf16>, vector<16x128xbf16> -> vector<144x128xbf16>
    %56 = tpu.concatenate %32, %33, %34, %37, %38, %39, %42, %43, %44 in 0 : vector<16x128xbf16>, vector<16x128xbf16>, vector<16x128xbf16>, vector<16x128xbf16>, vector<16x128xbf16>, vector<16x128xbf16>, vector<16x128xbf16>, vector<16x128xbf16>, vector<16x128xbf16> -> vector<144x128xbf16>
    %57 = tpu.concatenate %37, %38, %39, %42, %43, %44, %47, %48, %49 in 0 : vector<16x128xbf16>, vector<16x128xbf16>, vector<16x128xbf16>, vector<16x128xbf16>, vector<16x128xbf16>, vector<16x128xbf16>, vector<16x128xbf16>, vector<16x128xbf16>, vector<16x128xbf16> -> vector<144x128xbf16>
    %58 = tpu.concatenate %50, %51, %52, %53, %54, %55, %56, %57 in 1 : vector<144x128xbf16>, vector<144x128xbf16>, vector<144x128xbf16>, vector<144x128xbf16>, vector<144x128xbf16>, vector<144x128xbf16>, vector<144x128xbf16>, vector<144x128xbf16> -> vector<144x1024xbf16>
    %c0_32 = arith.constant 0 : index
    %c0_33 = arith.constant 0 : index
    %59 = vector.load %arg4[%c0_32, %c0_33] : memref<8x144xbf16, #tpu.memory_space<vmem>>, vector<8x144xbf16>
    %cst = arith.constant dense<0.000000e+00> : vector<8x1024xf32>
    %60 = tpu.matmul %59, %58, %cst {dimension_numbers = #tpu.dot_dimension_numbers<[1], [0], [0], [1], [0, 0, 1, 1], [], []>} : vector<8x144xbf16>, vector<144x1024xbf16>, vector<8x1024xf32> -> vector<8x1024xf32>
    %c0_34 = arith.constant 0 : index
    %c0_35 = arith.constant 0 : index
    %61 = vector.load %arg5[%c0_34, %c0_35] : memref<8x1xf32, #tpu.memory_space<vmem>>, vector<8x1xf32>
    %62 = vector.broadcast %61 : vector<8x1xf32> to vector<8x1024xf32>
    %63 = arith.mulf %60, %62 : vector<8x1024xf32>
    %c0_36 = arith.constant 0 : index
    %c0_37 = arith.constant 0 : index
    %64 = vector.load %arg6[%c0_36, %c0_37] : memref<8x1xf32, #tpu.memory_space<vmem>>, vector<8x1xf32>
    %65 = vector.broadcast %64 : vector<8x1xf32> to vector<8x1024xf32>
    %66 = arith.addf %63, %65 : vector<8x1024xf32>
    %cst_38 = arith.constant 0.000000e+00 : f32
    %67 = vector.broadcast %cst_38 : f32 to vector<8x1024xf32>
    %68 = arith.maximumf %66, %67 : vector<8x1024xf32>
    %69 = arith.truncf %68 : vector<8x1024xf32> to vector<8x1024xbf16>
    %c0_39 = arith.constant 0 : index
    %c0_40 = arith.constant 0 : index
    %c0_41 = arith.constant 0 : index
    %c0_42 = arith.constant 0 : index
    %70 = vector.load %arg8[%c0_39, %c0_40, %c0_41, %c0_42] : memref<1x1x8x1024xbf16, #tpu.memory_space<vmem>>, vector<1x1x8x1024xbf16>
    %71 = vector.shape_cast %70 : vector<1x1x8x1024xbf16> to vector<8x1024xbf16>
    %72 = vector.shape_cast %69 : vector<8x1024xbf16> to vector<1x1x8x1024xbf16>
    tpu.vector_store %arg8[%c0_39, %c0_40, %c0_41, %c0_42], %72 {strides = array<i32>} : memref<1x1x8x1024xbf16, #tpu.memory_space<vmem>>, vector<1x1x8x1024xbf16>,
    return
  }
  func.func @transform_0(%arg0: i32, %arg1: i32) -> (i32, i32, i32, i32) {
    %c0_i32 = arith.constant 0 : i32
    %c0_i32_0 = arith.constant 0 : i32
    %c0_i32_1 = arith.constant 0 : i32
    return %arg0, %arg1, %c0_i32, %c0_i32_0 : i32, i32, i32, i32
  }
  func.func @transform_1(%arg0: i32, %arg1: i32) -> (i32, i32, i32, i32) {
    %c1_i32 = arith.constant 1 : i32
    %0 = arith.addi %arg1, %c1_i32 : i32
    %c4_i32 = arith.constant 4 : i32
    %1 = arith.muli %0, %c4_i32 : i32
    %c0_i32 = arith.constant 0 : i32
    %c0_i32_0 = arith.constant 0 : i32
    %c0_i32_1 = arith.constant 0 : i32
    return %arg0, %1, %c0_i32, %c0_i32_0 : i32, i32, i32, i32
  }
  func.func @transform_2(%arg0: i32, %arg1: i32) -> (i32, i32) {
    %c0_i32 = arith.constant 0 : i32
    %c0_i32_0 = arith.constant 0 : i32
    %c0_i32_1 = arith.constant 0 : i32
    return %c0_i32, %c0_i32_0 : i32, i32
  }
  func.func @transform_3(%arg0: i32, %arg1: i32) -> (i32, i32) {
    %c0_i32 = arith.constant 0 : i32
    %c0_i32_0 = arith.constant 0 : i32
    %c0_i32_1 = arith.constant 0 : i32
    return %c0_i32, %c0_i32_0 : i32, i32
  }
  func.func @transform_4(%arg0: i32, %arg1: i32) -> (i32, i32) {
    %c0_i32 = arith.constant 0 : i32
    %c0_i32_0 = arith.constant 0 : i32
    %c0_i32_1 = arith.constant 0 : i32
    return %c0_i32, %c0_i32_0 : i32, i32
  }
  func.func @transform_5(%arg0: i32, %arg1: i32) -> i32 {
    %c0_i32 = arith.constant 0 : i32
    %c0_i32_0 = arith.constant 0 : i32
    return %c0_i32 : i32
  }
  func.func @transform_6(%arg0: i32, %arg1: i32) -> (i32, i32, i32, i32) {
    %c0_i32 = arith.constant 0 : i32
    %c0_i32_0 = arith.constant 0 : i32
    %c0_i32_1 = arith.constant 0 : i32
    return %arg0, %arg1, %c0_i32, %c0_i32_0 : i32, i32, i32, i32
  }
}

</mosaic_0001>

<llo_original>
// kernel: _conv2d_bias_act.1
$region0: #{_conv2d_bias_act.1}
  #allocation0 [shape = 'u32[]', space=smem, size = 0x4, offset = 0x4, fixed_abs, tag = 'smem constant byte address 0x4 - core index']
  #allocation1 [shape = 'u32[144,128]{1,0:T(1,128)}', space=vmem, size = 0x12000, scoped, tag = 'internal scratch']
  #allocation2 [shape = 'f32[1]{0:T(128)S(6)}', space=smem, size = 0x200, scoped, tag = 'scoped memory for _conv2d_bias_act.1']
  %s0 = inlined_call_operand.vmem [shape: bf16[2,18,16,130], index: 0, kind: input, shape index: {}, may-alias: {0,1}]
  %s1 = inlined_call_operand.vmem [shape: bf16[2,18,16,130], index: 1, kind: input, shape index: {}, may-alias: {0,1}]
  %s2 = inlined_call_operand.vmem [shape: bf16[8,144], index: 2, kind: input, shape index: {}]
  %s3 = inlined_call_operand.vmem [shape: f32[8,1], index: 3, kind: input, shape index: {}]
  %s4 = inlined_call_operand.vmem [shape: f32[8,1], index: 4, kind: input, shape index: {}]
  %s5 = inlined_call_operand.<no memory space> [shape: f32[1], index: 5, kind: input, shape index: {}]
  %s6 = inlined_call_operand.vmem [shape: bf16[2,2,8,1024], index: 6, kind: output, shape index: {}]
  %s7 = sld [smem:[#allocation0]]
  $region57: #{_conv2d_bias_act.1} parent=0
    _
  %s9 = ssub.s32 1, %s7
  %s10 = scalar_select 0, %s9, %s7
  %11 = sst [smem:[#allocation2]] %s5
  loop: start=0, step=1, limit=6
  $region2: #{_conv2d_bias_act.1} parent=0 // loop_pre_header
    _
  $region3: #{_conv2d_bias_act.1} parent=0 // loop_header
    %s13 = sphi 0, %s17
    %p14 = scmp.ge.s32.totalorder %s13, 6
    %s20 = sphi 0, %s32
    %s21 = sphi 0, %s28
    %s22 = sphi 0, %s20
    %s23 = sphi 0, %s21
    %s24 = sphi 0, %s22
    %s25 = sphi 0, %s23
    %s37 = sphi 0, %s39
    %s40 = sphi 0, %s37
    %s41 = sphi 0, %s40
    %s57 = sphi 0, %s41
    %s69 = sphi 0, %s71
    %s72 = sphi 0, %s69
    %s73 = sphi 0, %s72
    %s89 = sphi 0, %s73
    %s93 = sphi 0, %s93
    %s95 = sphi 0, %s93
    %s96 = sphi 0, %s95
    %s110 = sphi 0, %s96
    %s114 = sphi 0, %s114
    %s116 = sphi 0, %s114
    %s117 = sphi 0, %s116
    %s131 = sphi 0, %s117
    %s135 = sphi 0, %s135
    %s137 = sphi 0, %s135
    %s138 = sphi 0, %s137
    %s152 = sphi 0, %s138
    %s156 = sphi 0, %s156
    %s158 = sphi 0, %s156
    %s159 = sphi 0, %s158
    %s173 = sphi 0, %s159
    %s181 = sphi 0, %s183
    %s184 = sphi 0, %s181
    %s185 = sphi 0, %s184
    %s201 = sphi 0, %s185
  $region4: #{_conv2d_bias_act.1} parent=0 // loop_header_branch
    %16 = sbr.rel (%p14) target = $region8
  $region5: #{_conv2d_bias_act.1} parent=0 // loop_body
    %s18 = ssub.s32 %s13, 1
    %s19 = ssub.s32 %s13, 2
    %s26 = sadd.s32 1, %s21
    %p27 = scmp.ge.s32.totalorder %s26, 2
    %s28 = scalar_select %p27, 0, %s26
    %s29 = sadd.s32 1, %s20
    %s30 = scalar_select %p27, %s29, %s20
    %p31 = scmp.ge.s32.totalorder %s30, 2
    %s32 = scalar_select %p31, 0, %s30
    %s33 = ssub.s32 %s20, %s32
    %s34 = ssub.s32 %s21, %s28
    %s35 = sor.u32 %s33, %s34
    %p36 = scmp.eq.s32.totalorder %s35, 0
    %s38 = sadd.s32 %s37, 1
    %s39 = scalar_select %p36, %s37, %s38
    %p42 = pneg %p36
    %p43 = scmp.eq.s32.totalorder %s13, 3
    %p44 = por %p42, %p43
    %p45 = scmp.ne.s32.totalorder %s37, %s40
    %p46 = scmp.eq.s32.totalorder %s13, 0
    %p47 = por %p45, %p46
    %p48 = scmp.ne.s32.totalorder %s37, %s40
    %p49 = scmp.eq.s32.totalorder %s18, 3
    %p50 = por %p48, %p49
    %p51 = scmp.ne.s32.totalorder %s40, %s41
    %p52 = scmp.eq.s32.totalorder %s18, 0
    %p53 = por %p51, %p52
    %p54 = scmp.ne.s32.totalorder %s40, %s41
    %p55 = scmp.eq.s32.totalorder %s19, 3
    %p56 = por %p54, %p55
    %p58 = scmp.ne.s32.totalorder %s41, %s57
    %p59 = scmp.eq.s32.totalorder %s19, 0
    %p60 = por %p58, %p59
    %s61 = sadd.s32 %s21, 1
    %s62 = smul.u32 %s61, 4
    %s63 = sadd.s32 %s28, 1
    %s64 = smul.u32 %s63, 4
    %s65 = ssub.s32 %s20, %s32
    %s66 = ssub.s32 %s62, %s64
    %s67 = sor.u32 %s65, %s66
    %p68 = scmp.eq.s32.totalorder %s67, 0
    %s70 = sadd.s32 %s69, 1
    %s71 = scalar_select %p68, %s69, %s70
    %p74 = pneg %p68
    %p75 = scmp.eq.s32.totalorder %s13, 3
    %p76 = por %p74, %p75
    %p77 = scmp.ne.s32.totalorder %s69, %s72
    %p78 = scmp.eq.s32.totalorder %s13, 0
    %p79 = por %p77, %p78
    %p80 = scmp.ne.s32.totalorder %s69, %s72
    %p81 = scmp.eq.s32.totalorder %s18, 3
    %p82 = por %p80, %p81
    %p83 = scmp.ne.s32.totalorder %s72, %s73
    %p84 = scmp.eq.s32.totalorder %s18, 0
    %p85 = por %p83, %p84
    %p86 = scmp.ne.s32.totalorder %s72, %s73
    %p87 = scmp.eq.s32.totalorder %s19, 3
    %p88 = por %p86, %p87
    %p90 = scmp.ne.s32.totalorder %s73, %s89
    %p91 = scmp.eq.s32.totalorder %s19, 0
    %p92 = por %p90, %p91
    %s94 = sadd.s32 %s93, 1
    %p97 = scmp.eq.s32.totalorder %s13, 3
    %p98 = scmp.ne.s32.totalorder %s93, %s95
    %p99 = scmp.eq.s32.totalorder %s13, 0
    %p100 = por %p98, %p99
    %p101 = scmp.ne.s32.totalorder %s93, %s95
    %p102 = scmp.eq.s32.totalorder %s18, 3
    %p103 = por %p101, %p102
    %p104 = scmp.ne.s32.totalorder %s95, %s96
    %p105 = scmp.eq.s32.totalorder %s18, 0
    %p106 = por %p104, %p105
    %p107 = scmp.ne.s32.totalorder %s95, %s96
    %p108 = scmp.eq.s32.totalorder %s19, 3
    %p109 = por %p107, %p108
    %p111 = scmp.ne.s32.totalorder %s96, %s110
    %p112 = scmp.eq.s32.totalorder %s19, 0
    %p113 = por %p111, %p112
    %s115 = sadd.s32 %s114, 1
    %p118 = scmp.eq.s32.totalorder %s13, 3
    %p119 = scmp.ne.s32.totalorder %s114, %s116
    %p120 = scmp.eq.s32.totalorder %s13, 0
    %p121 = por %p119, %p120
    %p122 = scmp.ne.s32.totalorder %s114, %s116
    %p123 = scmp.eq.s32.totalorder %s18, 3
    %p124 = por %p122, %p123
    %p125 = scmp.ne.s32.totalorder %s116, %s117
    %p126 = scmp.eq.s32.totalorder %s18, 0
    %p127 = por %p125, %p126
    %p128 = scmp.ne.s32.totalorder %s116, %s117
    %p129 = scmp.eq.s32.totalorder %s19, 3
    %p130 = por %p128, %p129
    %p132 = scmp.ne.s32.totalorder %s117, %s131
    %p133 = scmp.eq.s32.totalorder %s19, 0
    %p134 = por %p132, %p133
    %s136 = sadd.s32 %s135, 1
    %p139 = scmp.eq.s32.totalorder %s13, 3
    %p140 = scmp.ne.s32.totalorder %s135, %s137
    %p141 = scmp.eq.s32.totalorder %s13, 0
    %p142 = por %p140, %p141
    %p143 = scmp.ne.s32.totalorder %s135, %s137
    %p144 = scmp.eq.s32.totalorder %s18, 3
    %p145 = por %p143, %p144
    %p146 = scmp.ne.s32.totalorder %s137, %s138
    %p147 = scmp.eq.s32.totalorder %s18, 0
    %p148 = por %p146, %p147
    %p149 = scmp.ne.s32.totalorder %s137, %s138
    %p150 = scmp.eq.s32.totalorder %s19, 3
    %p151 = por %p149, %p150
    %p153 = scmp.ne.s32.totalorder %s138, %s152
    %p154 = scmp.eq.s32.totalorder %s19, 0
    %p155 = por %p153, %p154
    %s157 = sadd.s32 %s156, 1
    %p160 = scmp.eq.s32.totalorder %s13, 3
    %p161 = scmp.ne.s32.totalorder %s156, %s158
    %p162 = scmp.eq.s32.totalorder %s13, 0
    %p163 = por %p161, %p162
    %p164 = scmp.ne.s32.totalorder %s156, %s158
    %p165 = scmp.eq.s32.totalorder %s18, 3
    %p166 = por %p164, %p165
    %p167 = scmp.ne.s32.totalorder %s158, %s159
    %p168 = scmp.eq.s32.totalorder %s18, 0
    %p169 = por %p167, %p168
    %p170 = scmp.ne.s32.totalorder %s158, %s159
    %p171 = scmp.eq.s32.totalorder %s19, 3
    %p172 = por %p170, %p171
    %p174 = scmp.ne.s32.totalorder %s159, %s173
    %p175 = scmp.eq.s32.totalorder %s19, 0
    %p176 = por %p174, %p175
    %s177 = ssub.s32 %s20, %s32
    %s178 = ssub.s32 %s21, %s28
    %s179 = sor.u32 %s177, %s178
    %p180 = scmp.eq.s32.totalorder %s179, 0
    %s182 = sadd.s32 %s181, 1
    %s183 = scalar_select %p180, %s181, %s182
    %p186 = pneg %p180
    %p187 = scmp.eq.s32.totalorder %s13, 3
    %p188 = por %p186, %p187
    %p189 = scmp.ne.s32.totalorder %s181, %s184
    %p190 = scmp.eq.s32.totalorder %s13, 0
    %p191 = por %p189, %p190
    %p192 = scmp.ne.s32.totalorder %s181, %s184
    %p193 = scmp.eq.s32.totalorder %s18, 3
    %p194 = por %p192, %p193
    %p195 = scmp.ne.s32.totalorder %s184, %s185
    %p196 = scmp.eq.s32.totalorder %s18, 0
    %p197 = por %p195, %p196
    %p198 = scmp.ne.s32.totalorder %s184, %s185
    %p199 = scmp.eq.s32.totalorder %s19, 3
    %p200 = por %p198, %p199
    %p202 = scmp.ne.s32.totalorder %s185, %s201
    %p203 = scmp.eq.s32.totalorder %s19, 0
    %p204 = por %p202, %p203
    %p205 = scmp.le.s32.totalorder 1, %s13
    %p206 = scmp.lt.s32.totalorder %s13, 5
    %p207 = pnand %p205, %p206
    %p208 = pneg %p207
    // Predicated region
    $region9: #{_conv2d_bias_act.1} parent=5 // pred_check
      _
    $region10: #{_conv2d_bias_act.1} parent=5 // pred_check_branch
      %210 = sbr.rel (%p207) target = $region12
    $region11: #{_conv2d_bias_act.1} parent=5 // pred_region
      %s211 = ssub.s32 %s13, 1
      // Predicated region
      $region13: #{_conv2d_bias_act.1} parent=11 // pred_check
        %p212 = pneg %p106
      $region14: #{_conv2d_bias_act.1} parent=11 // pred_check_branch
        %214 = sbr.rel (%p212) target = $region16
      $region15: #{_conv2d_bias_act.1} parent=11 // pred_region
        _
      $region16: #{_conv2d_bias_act.1} parent=11 // pred_fallthru
        _
      // Predicated region
      $region17: #{_conv2d_bias_act.1} parent=11 // pred_check
        %p215 = pneg %p127
      $region18: #{_conv2d_bias_act.1} parent=11 // pred_check_branch
        %217 = sbr.rel (%p215) target = $region20
      $region19: #{_conv2d_bias_act.1} parent=11 // pred_region
        _
      $region20: #{_conv2d_bias_act.1} parent=11 // pred_fallthru
        _
      // Predicated region
      $region21: #{_conv2d_bias_act.1} parent=11 // pred_check
        %p218 = pneg %p148
      $region22: #{_conv2d_bias_act.1} parent=11 // pred_check_branch
        %220 = sbr.rel (%p218) target = $region24
      $region23: #{_conv2d_bias_act.1} parent=11 // pred_region
        _
      $region24: #{_conv2d_bias_act.1} parent=11 // pred_fallthru
        _
      // Predicated region
      $region25: #{_conv2d_bias_act.1} parent=11 // pred_check
        %p221 = pneg %p169
      $region26: #{_conv2d_bias_act.1} parent=11 // pred_check_branch
        %223 = sbr.rel (%p221) target = $region28
      $region27: #{_conv2d_bias_act.1} parent=11 // pred_region
        _
      $region28: #{_conv2d_bias_act.1} parent=11 // pred_fallthru
        _
    $region12: #{_conv2d_bias_act.1} parent=5 // pred_fallthru
      _
    %p224 = scmp.lt.s32.totalorder %s13, 4
    // Predicated region
    $region29: #{_conv2d_bias_act.1} parent=5 // pred_check
      %p225 = pneg %p224
    $region30: #{_conv2d_bias_act.1} parent=5 // pred_check_branch
      %227 = sbr.rel (%p225) target = $region32
    $region31: #{_conv2d_bias_act.1} parent=5 // pred_region
      // Predicated region
      $region33: #{_conv2d_bias_act.1} parent=31 // pred_check
        %p228 = pneg %p47
      $region34: #{_conv2d_bias_act.1} parent=31 // pred_check_branch
        %230 = sbr.rel (%p228) target = $region36
      $region35: #{_conv2d_bias_act.1} parent=31 // pred_region
        %s231 = smul.u32 8, %s21
        %s232 = ssub.s32 18, %s231
        %p233 = scmp.lt.s32.totalorder %s232, 8
        %s234 = scalar_select %p233, %s232, 8
        %s235 = smul.u32 64, %s234
        %s236 = smul.u32 %s235, 2
        %s237 = smul.u32 %s236, 2
        %p238 = scmp.lt.s32.totalorder %s20, 1
        %s239 = scalar_select %p238, %s20, 1
        %p240 = scmp.lt.s32.totalorder %s231, 17
        %s241 = scalar_select %p240, %s231, 17
        %s242 = smul.addr %s241, 4
        %s243 = smul.addr %s239, 72
        %s244 = sadd.s32 %s242, %s243
        %s245 = smul.addr %s244, 4
        %s246 = scalar_lea.vmem %s0, %s245
        %s247 = smul.u32 8, %s21
        %s248 = ssub.s32 18, %s247
        %p249 = scmp.lt.s32.totalorder %s248, 8
        %s250 = scalar_select %p249, %s248, 8
        %s251 = smul.u32 64, %s250
        %s252 = smul.u32 %s251, 2
        %s253 = smul.u32 %s252, 2
      $region36: #{_conv2d_bias_act.1} parent=31 // pred_fallthru
        _
      // Predicated region
      $region37: #{_conv2d_bias_act.1} parent=31 // pred_check
        %p254 = pneg %p79
      $region38: #{_conv2d_bias_act.1} parent=31 // pred_check_branch
        %256 = sbr.rel (%p254) target = $region40
      $region39: #{_conv2d_bias_act.1} parent=31 // pred_region
        %s257 = sadd.s32 %s21, 1
        %s258 = smul.u32 %s257, 4
        %s259 = smul.u32 2, %s258
        %p260 = scmp.lt.s32.totalorder %s20, 1
        %s261 = scalar_select %p260, %s20, 1
        %p262 = scmp.lt.s32.totalorder %s259, 17
        %s263 = scalar_select %p262, %s259, 17
        %s264 = smul.addr %s263, 4
        %s265 = smul.addr %s261, 72
        %s266 = sadd.s32 %s264, %s265
        %s267 = smul.addr %s266, 4
        %s268 = scalar_lea.vmem %s1, %s267
        %s269 = sadd.s32 %s21, 1
        %s270 = smul.u32 %s269, 4
        %s271 = smul.u32 2, %s270
      $region40: #{_conv2d_bias_act.1} parent=31 // pred_fallthru
        _
    $region32: #{_conv2d_bias_act.1} parent=5 // pred_fallthru
      _
    %p272 = scmp.le.s32.totalorder 1, %s13
    %p273 = scmp.lt.s32.totalorder %s13, 5
    %p274 = pnand %p272, %p273
    %p275 = pneg %p274
    // Predicated region
    $region41: #{_conv2d_bias_act.1} parent=5 // pred_check
      _
    $region42: #{_conv2d_bias_act.1} parent=5 // pred_check_branch
      %277 = sbr.rel (%p274) target = $region44
    $region43: #{_conv2d_bias_act.1} parent=5 // pred_region
      %s278 = ssub.s32 %s13, 1
      %s279 = smul.u32 8, %s23
      %s280 = ssub.s32 18, %s279
      %p281 = scmp.lt.s32.totalorder %s280, 8
      %s282 = scalar_select %p281, %s280, 8
      %s283 = smul.u32 64, %s282
      %s284 = smul.u32 %s283, 2
      %s285 = smul.u32 %s284, 2
      %p286 = scmp.lt.s32.totalorder %s22, 1
      %s287 = scalar_select %p286, %s22, 1
      %p288 = scmp.lt.s32.totalorder %s279, 17
      %s289 = scalar_select %p288, %s279, 17
      %s290 = smul.addr %s289, 4
      %s291 = smul.addr %s287, 72
      %s292 = sadd.s32 %s290, %s291
      %s293 = smul.addr %s292, 4
      %s294 = scalar_lea.vmem %s0, %s293
      %p295 = pneg %p53
      %p296 = pneg %p50
      %s297 = sadd.s32 %s23, 1
      %s298 = smul.u32 %s297, 4
      %s299 = smul.u32 2, %s298
      %p300 = scmp.lt.s32.totalorder %s22, 1
      %s301 = scalar_select %p300, %s22, 1
      %p302 = scmp.lt.s32.totalorder %s299, 17
      %s303 = scalar_select %p302, %s299, 17
      %s304 = smul.addr %s303, 4
      %s305 = smul.addr %s301, 72
      %s306 = sadd.s32 %s304, %s305
      %s307 = smul.addr %s306, 4
      %s308 = scalar_lea.vmem %s1, %s307
      %p309 = pneg %p85
      %p310 = pneg %p82
      %p311 = pneg %p106
      %p312 = pneg %p103
      %p313 = pneg %p127
      %p314 = pneg %p124
      %p315 = pneg %p148
      %p316 = pneg %p145
      %p317 = pneg %p169
      %p318 = pneg %p166
      %p319 = pneg %p197
      %p320 = pneg %p194
      %p321 = scmp.lt.s32.totalorder %s22, 1
      %s322 = scalar_select %p321, %s22, 1
      %p323 = scmp.lt.s32.totalorder %s23, 1
      %s324 = scalar_select %p323, %s23, 1
      %s325 = smul.addr %s324, 8
      %s326 = smul.addr %s322, 16
      %s327 = sadd.s32 %s325, %s326
      %s328 = smul.addr %s327, 4
      %s329 = scalar_lea.vmem %s6, %s328
      %s330 = smul.u32 8, %s23
      %s331 = ssub.s32 18, %s330
      %p332 = scmp.lt.s32.totalorder %s331, 8
      %s333 = scalar_select %p332, %s331, 8
      %s334 = smul.u32 64, %s333
      %s335 = smul.u32 %s334, 2
      %s336 = smul.u32 %s335, 2
      %p337 = scmp.lt.s32.totalorder %s22, 1
      %s338 = scalar_select %p337, %s22, 1
      %p339 = scmp.lt.s32.totalorder %s330, 17
      %s340 = scalar_select %p339, %s330, 17
      %s341 = smul.addr %s340, 4
      %s342 = smul.addr %s338, 72
      %s343 = sadd.s32 %s341, %s342
      %s344 = smul.addr %s343, 4
      %s345 = scalar_lea.vmem %s0, %s344
      %s346 = smul.u32 8, %s23
      %s347 = ssub.s32 18, %s346
      %p348 = scmp.lt.s32.totalorder %s347, 8
      %s349 = scalar_select %p348, %s347, 8
      %s350 = smul.u32 64, %s349
      %s351 = smul.u32 %s350, 2
      %s352 = smul.u32 %s351, 2
      %s353 = sadd.s32 %s23, 1
      %s354 = smul.u32 %s353, 4
      %s355 = smul.u32 2, %s354
      %p356 = scmp.lt.s32.totalorder %s22, 1
      %s357 = scalar_select %p356, %s22, 1
      %p358 = scmp.lt.s32.totalorder %s355, 17
      %s359 = scalar_select %p358, %s355, 17
      %s360 = smul.addr %s359, 4
      %s361 = smul.addr %s357, 72
      %s362 = sadd.s32 %s360, %s361
      %s363 = smul.addr %s362, 4
      %s364 = scalar_lea.vmem %s1, %s363
      %s365 = sadd.s32 %s23, 1
      %s366 = smul.u32 %s365, 4
      %s367 = smul.u32 2, %s366
      %p368 = scmp.lt.s32.totalorder %s22, 1
      %s369 = scalar_select %p368, %s22, 1
      %p370 = scmp.lt.s32.totalorder %s23, 1
      %s371 = scalar_select %p370, %s23, 1
      %s372 = smul.addr %s371, 8
      %s373 = smul.addr %s369, 16
      %s374 = sadd.s32 %s372, %s373
      %s375 = smul.addr %s374, 4
      %s376 = scalar_lea.vmem %s6, %s375
      %v378 = vld [vmem:[%s345] sm:$0xff]
      %v379 = vld [vmem:[%s345 + $0x8] sm:$0xff]
      %s380 = scalar_lea.vmem %s345, 16
      %v381 = vld [vmem:[%s380] sm:$0xff]
      %v382 = vld [vmem:[%s380 + $0x8] sm:$0xff]
      %s383 = scalar_lea.vmem %s345, 32
      %v384 = vld [vmem:[%s383] sm:$0xff]
      %v385 = vld [vmem:[%s383 + $0x8] sm:$0xff]
      %s386 = scalar_lea.vmem %s345, 48
      %v387 = vld [vmem:[%s386] sm:$0xff]
      %v388 = vld [vmem:[%s386 + $0x8] sm:$0xff]
      %s389 = scalar_lea.vmem %s345, 64
      %v390 = vld [vmem:[%s389] sm:$0xff]
      %v391 = vld [vmem:[%s389 + $0x8] sm:$0xff]
      %s392 = scalar_lea.vmem %s345, 80
      %v393 = vld [vmem:[%s392] sm:$0xff]
      %v394 = vld [vmem:[%s392 + $0x8] sm:$0xff]
      %s395 = scalar_lea.vmem %s345, 96
      %v396 = vld [vmem:[%s395] sm:$0xff]
      %v397 = vld [vmem:[%s395 + $0x8] sm:$0xff]
      %s398 = scalar_lea.vmem %s345, 112
      %v399 = vld [vmem:[%s398] sm:$0xff]
      %v400 = vld [vmem:[%s398 + $0x8] sm:$0xff]
      %v401 = vld [vmem:[%s364] sm:$0xff]
      %v402 = vld [vmem:[%s364 + $0x8] sm:$0xff]
      %s403 = scalar_lea.vmem %s364, 16
      %v404 = vld [vmem:[%s403] sm:$0xff]
      %v405 = vld [vmem:[%s403 + $0x8] sm:$0xff]
      %v408 = vunpack.c.l.b16 %v378
      %v409 = vunpack.c.l.b16 %v379
      %v410 = vpack.c.b16 %v409, %v408
      %v412 = vunpack.c.h.b16 %v378
      %v413 = vunpack.c.h.b16 %v379
      %v414 = vpack.c.b16 %v413, %v412
      %415 = vrot.lane.b32.xlu0 %v410, 127
      %v416 = vpop.permute.xlu0 %415
      %417 = vrot.lane.b32.xlu0 %v414, 127
      %v418 = vpop.permute.xlu0 %417
      %vm419 = vcmask 1039360
      %v420 = vsel %vm419, %v416, %v418
      %422 = vrot.lane.b32.xlu0 %v410, 126
      %v423 = vpop.permute.xlu0 %422
      %424 = vrot.lane.b32.xlu0 %v414, 126
      %v425 = vpop.permute.xlu0 %424
      %vm426 = vcmask 1031168
      %v427 = vsel %vm426, %v423, %v425
      %v431 = vunpack.c.l.b16 %v381
      %v432 = vunpack.c.l.b16 %v382
      %v433 = vpack.c.b16 %v432, %v431
      %v435 = vunpack.c.h.b16 %v381
      %v436 = vunpack.c.h.b16 %v382
      %v437 = vpack.c.b16 %v436, %v435
      %438 = vrot.lane.b32.xlu0 %v433, 127
      %v439 = vpop.permute.xlu0 %438
      %440 = vrot.lane.b32.xlu0 %v437, 127
      %v441 = vpop.permute.xlu0 %440
      %v442 = vsel %vm419, %v439, %v441
      %444 = vrot.lane.b32.xlu0 %v433, 126
      %v445 = vpop.permute.xlu0 %444
      %446 = vrot.lane.b32.xlu0 %v437, 126
      %v447 = vpop.permute.xlu0 %446
      %v448 = vsel %vm426, %v445, %v447
      %v452 = vunpack.c.l.b16 %v384
      %v453 = vunpack.c.l.b16 %v385
      %v454 = vpack.c.b16 %v453, %v452
      %v456 = vunpack.c.h.b16 %v384
      %v457 = vunpack.c.h.b16 %v385
      %v458 = vpack.c.b16 %v457, %v456
      %459 = vrot.lane.b32.xlu0 %v454, 127
      %v460 = vpop.permute.xlu0 %459
      %461 = vrot.lane.b32.xlu0 %v458, 127
      %v462 = vpop.permute.xlu0 %461
      %v463 = vsel %vm419, %v460, %v462
      %465 = vrot.lane.b32.xlu0 %v454, 126
      %v466 = vpop.permute.xlu0 %465
      %467 = vrot.lane.b32.xlu0 %v458, 126
      %v468 = vpop.permute.xlu0 %467
      %v469 = vsel %vm426, %v466, %v468
      %v473 = vunpack.c.l.b16 %v387
      %v474 = vunpack.c.l.b16 %v388
      %v475 = vpack.c.b16 %v474, %v473
      %v477 = vunpack.c.h.b16 %v387
      %v478 = vunpack.c.h.b16 %v388
      %v479 = vpack.c.b16 %v478, %v477
      %480 = vrot.lane.b32.xlu0 %v475, 127
      %v481 = vpop.permute.xlu0 %480
      %482 = vrot.lane.b32.xlu0 %v479, 127
      %v483 = vpop.permute.xlu0 %482
      %v484 = vsel %vm419, %v481, %v483
      %486 = vrot.lane.b32.xlu0 %v475, 126
      %v487 = vpop.permute.xlu0 %486
      %488 = vrot.lane.b32.xlu0 %v479, 126
      %v489 = vpop.permute.xlu0 %488
      %v490 = vsel %vm426, %v487, %v489
      %v494 = vunpack.c.l.b16 %v390
      %v495 = vunpack.c.l.b16 %v391
      %v496 = vpack.c.b16 %v495, %v494
      %v498 = vunpack.c.h.b16 %v390
      %v499 = vunpack.c.h.b16 %v391
      %v500 = vpack.c.b16 %v499, %v498
      %501 = vrot.lane.b32.xlu0 %v496, 127
      %v502 = vpop.permute.xlu0 %501
      %503 = vrot.lane.b32.xlu0 %v500, 127
      %v504 = vpop.permute.xlu0 %503
      %v505 = vsel %vm419, %v502, %v504
      %507 = vrot.lane.b32.xlu0 %v496, 126
      %v508 = vpop.permute.xlu0 %507
      %509 = vrot.lane.b32.xlu0 %v500, 126
      %v510 = vpop.permute.xlu0 %509
      %v511 = vsel %vm426, %v508, %v510
      %v515 = vunpack.c.l.b16 %v393
      %v516 = vunpack.c.l.b16 %v394
      %v517 = vpack.c.b16 %v516, %v515
      %v519 = vunpack.c.h.b16 %v393
      %v520 = vunpack.c.h.b16 %v394
      %v521 = vpack.c.b16 %v520, %v519
      %522 = vrot.lane.b32.xlu0 %v517, 127
      %v523 = vpop.permute.xlu0 %522
      %524 = vrot.lane.b32.xlu0 %v521, 127
      %v525 = vpop.permute.xlu0 %524
      %v526 = vsel %vm419, %v523, %v525
      %528 = vrot.lane.b32.xlu0 %v517, 126
      %v529 = vpop.permute.xlu0 %528
      %530 = vrot.lane.b32.xlu0 %v521, 126
      %v531 = vpop.permute.xlu0 %530
      %v532 = vsel %vm426, %v529, %v531
      %v536 = vunpack.c.l.b16 %v396
      %v537 = vunpack.c.l.b16 %v397
      %v538 = vpack.c.b16 %v537, %v536
      %v540 = vunpack.c.h.b16 %v396
      %v541 = vunpack.c.h.b16 %v397
      %v542 = vpack.c.b16 %v541, %v540
      %543 = vrot.lane.b32.xlu0 %v538, 127
      %v544 = vpop.permute.xlu0 %543
      %545 = vrot.lane.b32.xlu0 %v542, 127
      %v546 = vpop.permute.xlu0 %545
      %v547 = vsel %vm419, %v544, %v546
      %549 = vrot.lane.b32.xlu0 %v538, 126
      %v550 = vpop.permute.xlu0 %549
      %551 = vrot.lane.b32.xlu0 %v542, 126
      %v552 = vpop.permute.xlu0 %551
      %v553 = vsel %vm426, %v550, %v552
      %v557 = vunpack.c.l.b16 %v399
      %v558 = vunpack.c.l.b16 %v400
      %v559 = vpack.c.b16 %v558, %v557
      %v561 = vunpack.c.h.b16 %v399
      %v562 = vunpack.c.h.b16 %v400
      %v563 = vpack.c.b16 %v562, %v561
      %564 = vrot.lane.b32.xlu0 %v559, 127
      %v565 = vpop.permute.xlu0 %564
      %566 = vrot.lane.b32.xlu0 %v563, 127
      %v567 = vpop.permute.xlu0 %566
      %v568 = vsel %vm419, %v565, %v567
      %570 = vrot.lane.b32.xlu0 %v559, 126
      %v571 = vpop.permute.xlu0 %570
      %572 = vrot.lane.b32.xlu0 %v563, 126
      %v573 = vpop.permute.xlu0 %572
      %v574 = vsel %vm426, %v571, %v573
      %v578 = vunpack.c.l.b16 %v401
      %v579 = vunpack.c.l.b16 %v402
      %v580 = vpack.c.b16 %v579, %v578
      %v582 = vunpack.c.h.b16 %v401
      %v583 = vunpack.c.h.b16 %v402
      %v584 = vpack.c.b16 %v583, %v582
      %585 = vrot.lane.b32.xlu0 %v580, 127
      %v586 = vpop.permute.xlu0 %585
      %587 = vrot.lane.b32.xlu0 %v584, 127
      %v588 = vpop.permute.xlu0 %587
      %v589 = vsel %vm419, %v586, %v588
      %591 = vrot.lane.b32.xlu0 %v580, 126
      %v592 = vpop.permute.xlu0 %591
      %593 = vrot.lane.b32.xlu0 %v584, 126
      %v594 = vpop.permute.xlu0 %593
      %v595 = vsel %vm426, %v592, %v594
      %v599 = vunpack.c.l.b16 %v404
      %v600 = vunpack.c.l.b16 %v405
      %v601 = vpack.c.b16 %v600, %v599
      %v603 = vunpack.c.h.b16 %v404
      %v604 = vunpack.c.h.b16 %v405
      %v605 = vpack.c.b16 %v604, %v603
      %606 = vrot.lane.b32.xlu0 %v601, 127
      %v607 = vpop.permute.xlu0 %606
      %608 = vrot.lane.b32.xlu0 %v605, 127
      %v609 = vpop.permute.xlu0 %608
      %v610 = vsel %vm419, %v607, %v609
      %612 = vrot.lane.b32.xlu0 %v601, 126
      %v613 = vpop.permute.xlu0 %612
      %614 = vrot.lane.b32.xlu0 %v605, 126
      %v615 = vpop.permute.xlu0 %614
      %v616 = vsel %vm426, %v613, %v615
      %v618 = vld [vmem:[%s2] sm:$0xff]
      %v620 = vunpack.c.l.b16 %v618
      %v621 = vunpack.c.h.b16 %v618
      %v622 = vpack.c.b16 %v620, %v620
      %v623 = vpack.c.b16 %v621, %v621
      %vm625 = vcmask 130048
      %v627 = vsel %vm625, %v623, 0
      %629 = vmatprep.subr.bf16.mxu0 %v484
      %630 = vmatpush1.bf16.msra.mxu0 %v463
      %631 = vmatprep.subr.bf16.mxu0 %v475
      %632 = vmatpush1.bf16.msra.mxu0 %v454
      %633 = vmatprep.subr.bf16.mxu0 %v469
      %634 = vmatpush1.bf16.msra.mxu0 %v448
      %635 = vmatprep.subr.bf16.mxu0 %v463
      %636 = vmatpush1.bf16.msra.mxu0 %v442
      %637 = vmatprep.subr.bf16.mxu0 %v454
      %638 = vmatpush1.bf16.msra.mxu0 %v433
      %639 = vmatprep.subr.bf16.mxu0 %v448
      %640 = vmatpush1.bf16.msra.mxu0 %v427
      %641 = vmatprep.subr.bf16.mxu0 %v442
      %642 = vmatpush1.bf16.msra.mxu0 %v420
      %643 = vmatprep.subr.bf16.mxu0 %v433
      %644 = vmatpush1.bf16.msra.mxu0 %v410
      %645 = vmatprep.subr.bf16.mxu0 0
      %646 = vmatpush2.bf16.msra.mxu0 0
      %647 = vmatprep.subr.bf16.mxu0 0
      %648 = vmatpush2.bf16.msra.mxu0 0
      %649 = vmatprep.subr.bf16.mxu0 0
      %650 = vmatpush2.bf16.msra.mxu0 0
      %651 = vmatprep.subr.bf16.mxu0 0
      %652 = vmatpush2.bf16.msra.mxu0 0
      %653 = vmatprep.subr.bf16.mxu0 0
      %654 = vmatpush2.bf16.msra.mxu0 0
      %655 = vmatprep.subr.bf16.mxu0 0
      %656 = vmatpush2.bf16.msra.mxu0 0
      %657 = vmatprep.subr.bf16.mxu0 0
      %658 = vmatpush2.bf16.msra.mxu0 0
      %659 = vmatprep.subr.bf16.mxu0 %v490
      %660 = vmatpush2.bf16.msra.mxu0 %v469
      %661 = vmatprep.mubr.bf16.mxu0 %v627
      %662 = vmatmul.mubr.bf16.gmra.mxu0 %v622
      %v663 = vpop.f32.mrf.mxu0
      %v664 = vadd.f32 0.0, %v663
      %v665 = vpop.f32.mrf.mxu0
      %v666 = vadd.f32 0.0, %v665
      %v667 = vpop.f32.mrf.mxu0
      %v668 = vpop.f32.mrf.mxu0
      %669 = vdwg.mxu0
      %670 = vmatprep.subr.bf16.mxu0 %v526
      %671 = vmatpush1.bf16.msra.mxu0 %v505
      %672 = vmatprep.subr.bf16.mxu0 %v517
      %673 = vmatpush1.bf16.msra.mxu0 %v496
      %674 = vmatprep.subr.bf16.mxu0 %v511
      %675 = vmatpush1.bf16.msra.mxu0 %v490
      %676 = vmatprep.subr.bf16.mxu0 %v505
      %677 = vmatpush1.bf16.msra.mxu0 %v484
      %678 = vmatprep.subr.bf16.mxu0 %v496
      %679 = vmatpush1.bf16.msra.mxu0 %v475
      %680 = vmatprep.subr.bf16.mxu0 %v490
      %681 = vmatpush1.bf16.msra.mxu0 %v469
      %682 = vmatprep.subr.bf16.mxu0 %v484
      %683 = vmatpush1.bf16.msra.mxu0 %v463
      %684 = vmatprep.subr.bf16.mxu0 %v475
      %685 = vmatpush1.bf16.msra.mxu0 %v454
      %686 = vmatprep.subr.bf16.mxu0 0
      %687 = vmatpush2.bf16.msra.mxu0 0
      %688 = vmatprep.subr.bf16.mxu0 0
      %689 = vmatpush2.bf16.msra.mxu0 0
      %690 = vmatprep.subr.bf16.mxu0 0
      %691 = vmatpush2.bf16.msra.mxu0 0
      %692 = vmatprep.subr.bf16.mxu0 0
      %693 = vmatpush2.bf16.msra.mxu0 0
      %694 = vmatprep.subr.bf16.mxu0 0
      %695 = vmatpush2.bf16.msra.mxu0 0
      %696 = vmatprep.subr.bf16.mxu0 0
      %697 = vmatpush2.bf16.msra.mxu0 0
      %698 = vmatprep.subr.bf16.mxu0 0
      %699 = vmatpush2.bf16.msra.mxu0 0
      %700 = vmatprep.subr.bf16.mxu0 %v532
      %701 = vmatpush2.bf16.msra.mxu0 %v511
      %702 = vmatprep.mubr.bf16.mxu0 %v627
      %703 = vmatmul.mubr.bf16.gmra.mxu0 %v622
      %v704 = vpop.f32.mrf.mxu0
      %v705 = vadd.f32 0.0, %v704
      %v706 = vpop.f32.mrf.mxu0
      %v707 = vadd.f32 0.0, %v706
      %v708 = vpop.f32.mrf.mxu0
      %v709 = vpop.f32.mrf.mxu0
      %710 = vdwg.mxu0
      %711 = vmatprep.subr.bf16.mxu0 %v568
      %712 = vmatpush1.bf16.msra.mxu0 %v547
      %713 = vmatprep.subr.bf16.mxu0 %v559
      %714 = vmatpush1.bf16.msra.mxu0 %v538
      %715 = vmatprep.subr.bf16.mxu0 %v553
      %716 = vmatpush1.bf16.msra.mxu0 %v532
      %717 = vmatprep.subr.bf16.mxu0 %v547
      %718 = vmatpush1.bf16.msra.mxu0 %v526
      %719 = vmatprep.subr.bf16.mxu0 %v538
      %720 = vmatpush1.bf16.msra.mxu0 %v517
      %721 = vmatprep.subr.bf16.mxu0 %v532
      %722 = vmatpush1.bf16.msra.mxu0 %v511
      %723 = vmatprep.subr.bf16.mxu0 %v526
      %724 = vmatpush1.bf16.msra.mxu0 %v505
      %725 = vmatprep.subr.bf16.mxu0 %v517
      %726 = vmatpush1.bf16.msra.mxu0 %v496
      %727 = vmatprep.subr.bf16.mxu0 0
      %728 = vmatpush2.bf16.msra.mxu0 0
      %729 = vmatprep.subr.bf16.mxu0 0
      %730 = vmatpush2.bf16.msra.mxu0 0
      %731 = vmatprep.subr.bf16.mxu0 0
      %732 = vmatpush2.bf16.msra.mxu0 0
      %733 = vmatprep.subr.bf16.mxu0 0
      %734 = vmatpush2.bf16.msra.mxu0 0
      %735 = vmatprep.subr.bf16.mxu0 0
      %736 = vmatpush2.bf16.msra.mxu0 0
      %737 = vmatprep.subr.bf16.mxu0 0
      %738 = vmatpush2.bf16.msra.mxu0 0
      %739 = vmatprep.subr.bf16.mxu0 0
      %740 = vmatpush2.bf16.msra.mxu0 0
      %741 = vmatprep.subr.bf16.mxu0 %v574
      %742 = vmatpush2.bf16.msra.mxu0 %v553
      %743 = vmatprep.mubr.bf16.mxu0 %v627
      %744 = vmatmul.mubr.bf16.gmra.mxu0 %v622
      %v745 = vpop.f32.mrf.mxu0
      %v746 = vadd.f32 0.0, %v745
      %v747 = vpop.f32.mrf.mxu0
      %v748 = vadd.f32 0.0, %v747
      %v749 = vpop.f32.mrf.mxu0
      %v750 = vpop.f32.mrf.mxu0
      %751 = vdwg.mxu0
      %752 = vmatprep.subr.bf16.mxu0 %v610
      %753 = vmatpush1.bf16.msra.mxu0 %v589
      %754 = vmatprep.subr.bf16.mxu0 %v601
      %755 = vmatpush1.bf16.msra.mxu0 %v580
      %756 = vmatprep.subr.bf16.mxu0 %v595
      %757 = vmatpush1.bf16.msra.mxu0 %v574
      %758 = vmatprep.subr.bf16.mxu0 %v589
      %759 = vmatpush1.bf16.msra.mxu0 %v568
      %760 = vmatprep.subr.bf16.mxu0 %v580
      %761 = vmatpush1.bf16.msra.mxu0 %v559
      %762 = vmatprep.subr.bf16.mxu0 %v574
      %763 = vmatpush1.bf16.msra.mxu0 %v553
      %764 = vmatprep.subr.bf16.mxu0 %v568
      %765 = vmatpush1.bf16.msra.mxu0 %v547
      %766 = vmatprep.subr.bf16.mxu0 %v559
      %767 = vmatpush1.bf16.msra.mxu0 %v538
      %768 = vmatprep.subr.bf16.mxu0 0
      %769 = vmatpush2.bf16.msra.mxu0 0
      %770 = vmatprep.subr.bf16.mxu0 0
      %771 = vmatpush2.bf16.msra.mxu0 0
      %772 = vmatprep.subr.bf16.mxu0 0
      %773 = vmatpush2.bf16.msra.mxu0 0
      %774 = vmatprep.subr.bf16.mxu0 0
      %775 = vmatpush2.bf16.msra.mxu0 0
      %776 = vmatprep.subr.bf16.mxu0 0
      %777 = vmatpush2.bf16.msra.mxu0 0
      %778 = vmatprep.subr.bf16.mxu0 0
      %779 = vmatpush2.bf16.msra.mxu0 0
      %780 = vmatprep.subr.bf16.mxu0 0
      %781 = vmatpush2.bf16.msra.mxu0 0
      %782 = vmatprep.subr.bf16.mxu0 %v616
      %783 = vmatpush2.bf16.msra.mxu0 %v595
      %784 = vmatprep.mubr.bf16.mxu0 %v627
      %785 = vmatmul.mubr.bf16.gmra.mxu0 %v622
      %v786 = vpop.f32.mrf.mxu0
      %v787 = vadd.f32 0.0, %v786
      %v788 = vpop.f32.mrf.mxu0
      %v789 = vadd.f32 0.0, %v788
      %v790 = vpop.f32.mrf.mxu0
      %v791 = vpop.f32.mrf.mxu0
      %792 = vdwg.mxu0
      %v793 = vld [vmem:[%s3] sm:$0xff]
      %795 = vset.pattern.permute.xlu0 0
      %796 = vperm.xlu0 %795, %v793
      %v797 = vpop.permute.xlu0 %796
      %v799 = vmul.f32 %v664, %v797
      %v800 = vmul.f32 %v666, %v797
      %v801 = vmul.f32 %v705, %v797
      %v802 = vmul.f32 %v707, %v797
      %v803 = vmul.f32 %v746, %v797
      %v804 = vmul.f32 %v748, %v797
      %v805 = vmul.f32 %v787, %v797
      %v806 = vmul.f32 %v789, %v797
      %v807 = vld [vmem:[%s4] sm:$0xff]
      %809 = vset.pattern.permute.xlu0 0
      %810 = vperm.xlu0 %809, %v807
      %v811 = vpop.permute.xlu0 %810
      %v813 = vadd.f32 %v799, %v811
      %v814 = vadd.f32 %v800, %v811
      %v815 = vadd.f32 %v801, %v811
      %v816 = vadd.f32 %v802, %v811
      %v817 = vadd.f32 %v803, %v811
      %v818 = vadd.f32 %v804, %v811
      %v819 = vadd.f32 %v805, %v811
      %v820 = vadd.f32 %v806, %v811
      %v821 = vmax.f32 %v813, 0.0
      %v822 = vmax.f32 %v814, 0.0
      %v823 = vmax.f32 %v815, 0.0
      %v824 = vmax.f32 %v816, 0.0
      %v825 = vmax.f32 %v817, 0.0
      %v826 = vmax.f32 %v818, 0.0
      %v827 = vmax.f32 %v819, 0.0
      %v828 = vmax.f32 %v820, 0.0
      %v829 = vpack.c.bf16 %v821, %v821
      %v830 = vpack.c.bf16 %v822, %v822
      %v831 = vpack.c.bf16 %v823, %v823
      %v832 = vpack.c.bf16 %v824, %v824
      %v833 = vpack.c.bf16 %v825, %v825
      %v834 = vpack.c.bf16 %v826, %v826
      %v835 = vpack.c.bf16 %v827, %v827
      %v836 = vpack.c.bf16 %v828, %v828
      %v845 = vunpack.c.l.b16 %v829
      %v846 = vunpack.c.l.b16 %v830
      %v847 = vunpack.c.l.b16 %v831
      %v848 = vunpack.c.l.b16 %v832
      %v849 = vunpack.c.l.b16 %v833
      %v850 = vunpack.c.l.b16 %v834
      %v851 = vunpack.c.l.b16 %v835
      %v852 = vunpack.c.l.b16 %v836
      %v853 = vpack.c.b16 %v846, %v845
      %v854 = vpack.c.b16 %v848, %v847
      %v855 = vpack.c.b16 %v850, %v849
      %v856 = vpack.c.b16 %v852, %v851
      %861 = vst [vmem:[%s376] sm:$0xff] %v853
      %862 = vst [vmem:[%s376 + $0x8] sm:$0xff] %v854
      %863 = vst [vmem:[%s376 + $0x10] sm:$0xff] %v855
      %864 = vst [vmem:[%s376 + $0x18] sm:$0xff] %v856
      %p865 = scmp.lt.s32.totalorder %s22, 1
      %s866 = scalar_select %p865, %s22, 1
      %p867 = scmp.lt.s32.totalorder %s23, 1
      %s868 = scalar_select %p867, %s23, 1
      %s869 = smul.addr %s868, 8
      %s870 = smul.addr %s866, 16
      %s871 = sadd.s32 %s869, %s870
      %s872 = smul.addr %s871, 4
      %s873 = scalar_lea.vmem %s6, %s872
      // Predicated region
      $region45: #{_conv2d_bias_act.1} parent=43 // pred_check
        %p874 = pneg %p194
      $region46: #{_conv2d_bias_act.1} parent=43 // pred_check_branch
        %876 = sbr.rel (%p874) target = $region48
      $region47: #{_conv2d_bias_act.1} parent=43 // pred_region
        _
      $region48: #{_conv2d_bias_act.1} parent=43 // pred_fallthru
        _
    $region44: #{_conv2d_bias_act.1} parent=5 // pred_fallthru
      _
    %p877 = scmp.le.s32.totalorder 2, %s13
    // Predicated region
    $region49: #{_conv2d_bias_act.1} parent=5 // pred_check
      %p878 = pneg %p877
    $region50: #{_conv2d_bias_act.1} parent=5 // pred_check_branch
      %880 = sbr.rel (%p878) target = $region52
    $region51: #{_conv2d_bias_act.1} parent=5 // pred_region
      %s881 = ssub.s32 %s13, 2
      // Predicated region
      $region53: #{_conv2d_bias_act.1} parent=51 // pred_check
        %p882 = pneg %p200
      $region54: #{_conv2d_bias_act.1} parent=51 // pred_check_branch
        %884 = sbr.rel (%p882) target = $region56
      $region55: #{_conv2d_bias_act.1} parent=51 // pred_region
        %p885 = scmp.lt.s32.totalorder %s24, 1
        %s886 = scalar_select %p885, %s24, 1
        %p887 = scmp.lt.s32.totalorder %s25, 1
        %s888 = scalar_select %p887, %s25, 1
        %s889 = smul.addr %s888, 8
        %s890 = smul.addr %s886, 16
        %s891 = sadd.s32 %s889, %s890
        %s892 = smul.addr %s891, 4
        %s893 = scalar_lea.vmem %s6, %s892
      $region56: #{_conv2d_bias_act.1} parent=51 // pred_fallthru
        _
    $region52: #{_conv2d_bias_act.1} parent=5 // pred_fallthru
      _
  $region6: #{_conv2d_bias_act.1} parent=0 // loop_footer
    %s17 = sadd.s32 1, %s13
  $region7: #{_conv2d_bias_act.1} parent=0 // loop_footer_branch
    %12 = sbr.rel target = $region3
  $region8: #{_conv2d_bias_act.1} parent=0 // loop_exit
    _

</llo_original>
